<compile_context>
chip_gen: v6e
topology: v6e:2x2x1
jax: 0.10.0
libtpu: 0.0.40
codegen_flags: <defaults>
</compile_context>

<pallas_src>
import jax
import jax.numpy as jnp
from jax.experimental import pallas as pl
from jax.experimental.pallas import tpu as pltpu

_LANE = 128


def _round_up(n, m):
    return ((n + m - 1) // m) * m


# ---------------------------------------------------------------------------
# One-time parameter preparation (hoist out of the forward / hot path).
# ---------------------------------------------------------------------------
def prepare_params(params, *, matmul_dtype=jnp.bfloat16):
    """params: list of 10 (W, b), W shape (in_dim, out_dim), b shape (out_dim,).

    Order: hidden1..hidden8, num head, layer head.
    Returns a dict of kernel-ready operands.
    """
    (w1, b1), (w2, b2) = params[0], params[1]
    mids = params[2:8]                                  # hidden3..hidden8
    (wn, bn), (wl, bl) = params[8], params[9]

    n_feature, n_h1 = int(w1.shape[0]), int(w1.shape[1])
    n_h2 = int(w2.shape[1])
    n_heads = int(wn.shape[1] + wl.shape[1])            # 3 + 5 = 8
    lane_w = _round_up(max(n_h1, n_h2, n_heads), _LANE)  # lane-dense width

    # Fused + zero-padded output head -> one matmul, unmasked full-lane store.
    wh = jnp.concatenate([wn, wl], axis=1)               # (H2, 8)
    wh = jnp.pad(wh, ((0, 0), (0, lane_w - n_heads)))    # (H2, 128)
    bh = jnp.concatenate([bn, bl], axis=0)               # (8,)

    # Stack the six identically-shaped hidden weights into a single operand.
    w_stack = jnp.stack([w for w, _ in mids], axis=0)    # (6, H2, H2)

    # All biases stacked into one lane-padded (9, lane_w) f32 array:
    #   row 0: b1, row 1: b2, rows 2..7: b3..b8, row 8: fused head bias.
    def _pad_b(b):
        return jnp.pad(b, (0, lane_w - b.shape[0]))

    b_all = jnp.stack([_pad_b(b1), _pad_b(b2)]
                      + [_pad_b(b) for _, b in mids]
                      + [_pad_b(bh)], axis=0)

    return {
        "w1": w1.astype(matmul_dtype),
        "w2": w2.astype(matmul_dtype),
        "w_stack": w_stack.astype(matmul_dtype),
        "wh": wh.astype(matmul_dtype),
        "b_all": b_all.astype(jnp.float32),
        "dims": (n_feature, n_h1, n_h2, n_heads, lane_w),
    }


# ---------------------------------------------------------------------------
# Kernel
# ---------------------------------------------------------------------------
def _make_kernel(act_dtype, n_h1, n_h2, lane_w):
    def kernel(x_ref, w1_ref, w2_ref, ws_ref, wh_ref, b_ref, out_ref):
        def lin(h, w, bias_row, width):
            # bf16 operands on the MXU, f32 accumulation; bias add in f32.
            acc = jnp.dot(h.astype(w.dtype), w,
                          preferred_element_type=jnp.float32)
            return acc + b_ref[bias_row:bias_row + 1, :width]

        def lin_relu(h, w, bias_row, width):
            return jnp.maximum(lin(h, w, bias_row, width), 0.0).astype(act_dtype)

        x = x_ref[...]
        h = lin_relu(x, w1_ref[...], 0, n_h1)            # hidden1 + relu
        h = lin_relu(h, w2_ref[...], 1, n_h2)            # hidden2 + relu
        xx = lin_relu(h, ws_ref[0], 2, n_h2)             # hidden3 + relu
        xx = lin_relu(xx, ws_ref[1], 3, n_h2)            # hidden4 + relu
        xx = lin_relu(xx, ws_ref[2], 4, n_h2)            # hidden5 + relu
        # drop5: identity at inference time
        h = (xx + h).astype(act_dtype)                   # residual 1
        xxx = lin_relu(h, ws_ref[3], 5, n_h2)            # hidden6 + relu
        xxx = lin_relu(xxx, ws_ref[4], 6, n_h2)          # hidden7 + relu
        xxx = lin_relu(xxx, ws_ref[5], 7, n_h2)          # hidden8 + relu
        # drop8: identity at inference time
        h = (xxx + h).astype(act_dtype)                  # residual 2
        # Fused heads [num(3) | layer(5) | zero pad] -> lane-dense store.
        out_ref[...] = lin(h, wh_ref[...], 8, lane_w)

    return kernel


# ---------------------------------------------------------------------------
# Wrapper
# ---------------------------------------------------------------------------
def net_finger_forward(x, params, *, block_batch=2048, act_dtype=jnp.float32):
    """x: (B, n_feature). params: prepare_params() dict (preferred, hoisted)
    or the raw list of 10 (W, b) pairs.

    Returns (num: (B, 3), layer: (B, 5)).
    act_dtype=jnp.bfloat16 is recommended on v6e/v7x (bf16-native VPU);
    the f32 default is the safe choice on v5e.
    """
    if not isinstance(params, dict):
        params = prepare_params(params)   # prefer hoisting this out of hot path
    n_feature, n_h1, n_h2, n_heads, lane_w = params["dims"]
    B = int(x.shape[0])
    assert int(x.shape[1]) == n_feature

    # Pad the batch only to a sublane multiple (8); the ragged last grid block
    # (if any) relies purely on row independence + Pallas' masked edge write.
    B8 = _round_up(B, 8)
    if B8 != B:
        x = jnp.pad(x, ((0, B8 - B), (0, 0)))

    TB = min(_round_up(block_batch, 8), B8)
    # Guarantee >= 2 grid steps for sizable batches so the "parallel" axis can
    # shard across v7x's two TensorCores (harmless on v5e/v6e).
    if TB >= B8 and B8 >= 128:
        TB = _round_up(pl.cdiv(B8, 2), 8)
    grid = (pl.cdiv(B8, TB),)

    const2 = lambda i: (0, 0)
    const3 = lambda i: (0, 0, 0)
    batch_map = lambda i: (i, 0)

    kernel = _make_kernel(act_dtype, n_h1, n_h2, lane_w)

    # Advisory cost hint for XLA scheduling around the custom call.
    mm_elems = (n_feature * n_h1 + n_h1 * n_h2
                + 6 * n_h2 * n_h2 + n_h2 * lane_w)
    flops = 2 * B8 * mm_elems
    w_bytes = mm_elems * jnp.dtype(params["w1"].dtype).itemsize + 9 * lane_w * 4
    bytes_accessed = int(w_bytes + B8 * (n_feature + lane_w) * 4)
    cost = pl.CostEstimate(flops=int(flops), transcendentals=0,
                           bytes_accessed=bytes_accessed)

    out = pl.pallas_call(
        kernel,
        out_shape=jax.ShapeDtypeStruct((B8, lane_w), jnp.float32),
        grid=grid,
        in_specs=[
            pl.BlockSpec((TB, n_feature), batch_map),
            pl.BlockSpec(tuple(params["w1"].shape), const2),
            pl.BlockSpec(tuple(params["w2"].shape), const2),
            pl.BlockSpec(tuple(params["w_stack"].shape), const3),
            pl.BlockSpec(tuple(params["wh"].shape), const2),
            pl.BlockSpec(tuple(params["b_all"].shape), const2),
        ],
        out_specs=pl.BlockSpec((TB, lane_w), batch_map),
        compiler_params=pltpu.CompilerParams(
            dimension_semantics=("parallel",)),
        cost_estimate=cost,
    )(x.astype(jnp.float32), params["w1"], params["w2"], params["w_stack"],
      params["wh"], params["b_all"])

    return out[:B, :3], out[:B, 3:n_heads]


# ---------------------------------------------------------------------------
# Parameter init (PyTorch nn.Linear default) and pure-JAX reference.
# ---------------------------------------------------------------------------
def init_linear(key, in_dim, out_dim):
    kw, kb = jax.random.split(key)
    bound = 1.0 / jnp.sqrt(jnp.float32(in_dim))
    w = jax.random.uniform(kw, (in_dim, out_dim), jnp.float32, -bound, bound)
    b = jax.random.uniform(kb, (out_dim,), jnp.float32, -bound, bound)
    return w, b


def make_params(key, n_feature, n_hidden1, n_hidden2):
    dims = [
        (n_feature, n_hidden1),   # hidden1
        (n_hidden1, n_hidden2),   # hidden2
        (n_hidden2, n_hidden2),   # hidden3
        (n_hidden2, n_hidden2),   # hidden4
        (n_hidden2, n_hidden2),   # hidden5
        (n_hidden2, n_hidden2),   # hidden6
        (n_hidden2, n_hidden2),   # hidden7
        (n_hidden2, n_hidden2),   # hidden8
        (n_hidden2, 3),           # num head
        (n_hidden2, 5),           # layer head
    ]
    keys = jax.random.split(key, len(dims))
    return [init_linear(k, i, o) for k, (i, o) in zip(keys, dims)]


def reference_forward(x, params, matmul_dtype=jnp.float32):
    """Pure-JAX reference. matmul_dtype=bfloat16 mimics the kernel's dots."""
    def lin(h, w, b):
        return jnp.dot(h.astype(matmul_dtype), w.astype(matmul_dtype),
                       preferred_element_type=jnp.float32) + b
    relu = jax.nn.relu
    (w1, b1), (w2, b2), (w3, b3), (w4, b4), (w5, b5), \
        (w6, b6), (w7, b7), (w8, b8), (wn, bn), (wl, bl) = params
    h = relu(lin(x, w1, b1))
    h = relu(lin(h, w2, b2))
    xx = relu(lin(h, w3, b3))
    xx = relu(lin(xx, w4, b4))
    xx = relu(lin(xx, w5, b5))
    h = xx + h
    xxx = relu(lin(h, w6, b6))
    xxx = relu(lin(xxx, w7, b7))
    xxx = relu(lin(xxx, w8, b8))
    h = xxx + h
    return lin(h, wn, bn), lin(h, wl, bl)


if __name__ == "__main__":
    key = jax.random.PRNGKey(0)
    k_x, k_p, k_x2 = jax.random.split(key, 3)

    batch, n_feature, n_hidden1, n_hidden2 = 8, 16, 32, 64
    x = jax.random.normal(k_x, (batch, n_feature), jnp.float32)
    raw_params = make_params(k_p, n_feature, n_hidden1, n_hidden2)
    params = prepare_params(raw_params)       # one-time weight prep (hoisted)

    # --- Small-batch run (single grid step) ------------------------------
    num, layer = net_finger_forward(x, params)
    num = jax.block_until_ready(num)
    layer = jax.block_until_ready(layer)
    assert num.shape == (batch, 3) and layer.shape == (batch, 5)

    # Tight check vs. a reference that uses the same bf16-operand /
    # f32-accumulate matmuls as the kernel...
    num_bf, layer_bf = reference_forward(x, raw_params, matmul_dtype=jnp.bfloat16)
    assert jnp.allclose(num, num_bf, atol=1e-3, rtol=1e-3)
    assert jnp.allclose(layer, layer_bf, atol=1e-3, rtol=1e-3)
    # ...and a loose check vs. full-f32 module semantics.
    num_f32, layer_f32 = reference_forward(x, raw_params, matmul_dtype=jnp.float32)
    assert jnp.allclose(num, num_f32, atol=0.15, rtol=0.1)
    assert jnp.allclose(layer, layer_f32, atol=0.15, rtol=0.1)

    # --- Larger batch ------------------------------------------------------
    batch2 = 300
    x2 = jax.random.normal(k_x2, (batch2, n_feature), jnp.float32)
    num2_bf, layer2_bf = reference_forward(x2, raw_params, matmul_dtype=jnp.bfloat16)

    # Default tile -> forced 2-step grid (v7x 2-TensorCore split), no padding
    # beyond the 8-row sublane multiple.
    num2, layer2 = net_finger_forward(x2, params)
    jax.block_until_ready((num2, layer2))
    assert num2.shape == (batch2, 3) and layer2.shape == (batch2, 5)
    assert jnp.allclose(num2, num2_bf, atol=1e-3, rtol=1e-3)
    assert jnp.allclose(layer2, layer2_bf, atol=1e-3, rtol=1e-3)

    # Small tile -> 3-step grid with a ragged (48-row) last block.
    num3, layer3 = net_finger_forward(x2, params, block_batch=128)
    jax.block_until_ready((num3, layer3))
    assert jnp.allclose(num3, num2_bf, atol=1e-3, rtol=1e-3)
    assert jnp.allclose(layer3, layer2_bf, atol=1e-3, rtol=1e-3)

    # bf16-activation variant (recommended on v6e/v7x); loose tolerance since
    # intermediates are rounded to bf16.
    num4, layer4 = net_finger_forward(x2, params, act_dtype=jnp.bfloat16)
    jax.block_until_ready((num4, layer4))
    assert jnp.allclose(num4, num2_bf, atol=0.1, rtol=0.1)
    assert jnp.allclose(layer4, layer2_bf, atol=0.1, rtol=0.1)

    print("KERNEL_OK")
</pallas_src>

<mosaic_0001>
module attributes {stable_mosaic.version = 11 : i64} {
  func.func @kernel(%arg0: i32, %arg1: memref<8x16xf32, #tpu.memory_space<vmem>>, %arg2: memref<16x32xbf16, #tpu.memory_space<vmem>>, %arg3: memref<32x64xbf16, #tpu.memory_space<vmem>>, %arg4: memref<6x64x64xbf16, #tpu.memory_space<vmem>>, %arg5: memref<64x128xbf16, #tpu.memory_space<vmem>>, %arg6: memref<9x128xf32, #tpu.memory_space<vmem>>, %arg7: memref<8x128xf32, #tpu.memory_space<vmem>>) attributes {dimension_semantics = [#tpu.dimension_semantics<parallel>], iteration_bounds = array<i64: 1>, scalar_prefetch = 0 : i64, scratch_operands = 0 : i64, tpu.core_type = #tpu.core_type<tc>, window_params = [{transform_indices = @transform_0, window_bounds = array<i64: 8, 16>}, {pipeline_mode = #tpu.pipeline_mode<synchronous>, transform_indices = @transform_1, window_bounds = array<i64: 16, 32>}, {pipeline_mode = #tpu.pipeline_mode<synchronous>, transform_indices = @transform_2, window_bounds = array<i64: 32, 64>}, {pipeline_mode = #tpu.pipeline_mode<synchronous>, transform_indices = @transform_3, window_bounds = array<i64: 6, 64, 64>}, {pipeline_mode = #tpu.pipeline_mode<synchronous>, transform_indices = @transform_4, window_bounds = array<i64: 64, 128>}, {pipeline_mode = #tpu.pipeline_mode<synchronous>, transform_indices = @transform_5, window_bounds = array<i64: 9, 128>}, {transform_indices = @transform_6, window_bounds = array<i64: 8, 128>}]} {
    %c0 = arith.constant 0 : index
    %c0_0 = arith.constant 0 : index
    %0 = vector.load %arg1[%c0, %c0_0] : memref<8x16xf32, #tpu.memory_space<vmem>>, vector<8x16xf32>
    %c0_1 = arith.constant 0 : index
    %c0_2 = arith.constant 0 : index
    %1 = vector.load %arg2[%c0_1, %c0_2] : memref<16x32xbf16, #tpu.memory_space<vmem>>, vector<16x32xbf16>
    %2 = arith.truncf %0 : vector<8x16xf32> to vector<8x16xbf16>
    %cst = arith.constant dense<0.000000e+00> : vector<8x32xf32>
    %3 = tpu.matmul %2, %1, %cst {dimension_numbers = #tpu.dot_dimension_numbers<[1], [0], [0], [1], [0, 0, 1, 1], [], []>} : vector<8x16xbf16>, vector<16x32xbf16>, vector<8x32xf32> -> vector<8x32xf32>
    %c0_3 = arith.constant 0 : index
    %c0_4 = arith.constant 0 : index
    %4 = vector.load %arg6[%c0_3, %c0_4] : memref<9x128xf32, #tpu.memory_space<vmem>>, vector<1x32xf32>
    %5 = vector.broadcast %4 : vector<1x32xf32> to vector<8x32xf32>
    %6 = arith.addf %3, %5 : vector<8x32xf32>
    %cst_5 = arith.constant 0.000000e+00 : f32
    %7 = vector.broadcast %cst_5 : f32 to vector<8x32xf32>
    %8 = arith.maximumf %6, %7 : vector<8x32xf32>
    %c0_6 = arith.constant 0 : index
    %c0_7 = arith.constant 0 : index
    %9 = vector.load %arg3[%c0_6, %c0_7] : memref<32x64xbf16, #tpu.memory_space<vmem>>, vector<32x64xbf16>
    %10 = arith.truncf %8 : vector<8x32xf32> to vector<8x32xbf16>
    %cst_8 = arith.constant dense<0.000000e+00> : vector<8x64xf32>
    %11 = tpu.matmul %10, %9, %cst_8 {dimension_numbers = #tpu.dot_dimension_numbers<[1], [0], [0], [1], [0, 0, 1, 1], [], []>} : vector<8x32xbf16>, vector<32x64xbf16>, vector<8x64xf32> -> vector<8x64xf32>
    %c1 = arith.constant 1 : index
    %c0_9 = arith.constant 0 : index
    %12 = vector.load %arg6[%c1, %c0_9] : memref<9x128xf32, #tpu.memory_space<vmem>>, vector<1x64xf32>
    %13 = vector.broadcast %12 : vector<1x64xf32> to vector<8x64xf32>
    %14 = arith.addf %11, %13 : vector<8x64xf32>
    %cst_10 = arith.constant 0.000000e+00 : f32
    %15 = vector.broadcast %cst_10 : f32 to vector<8x64xf32>
    %16 = arith.maximumf %14, %15 : vector<8x64xf32>
    %c0_11 = arith.constant 0 : index
    %c0_12 = arith.constant 0 : index
    %c0_13 = arith.constant 0 : index
    %17 = vector.load %arg4[%c0_11, %c0_12, %c0_13] : memref<6x64x64xbf16, #tpu.memory_space<vmem>>, vector<1x64x64xbf16>
    %18 = vector.shape_cast %17 : vector<1x64x64xbf16> to vector<64x64xbf16>
    %19 = arith.truncf %16 : vector<8x64xf32> to vector<8x64xbf16>
    %cst_14 = arith.constant dense<0.000000e+00> : vector<8x64xf32>
    %20 = tpu.matmul %19, %18, %cst_14 {dimension_numbers = #tpu.dot_dimension_numbers<[1], [0], [0], [1], [0, 0, 1, 1], [], []>} : vector<8x64xbf16>, vector<64x64xbf16>, vector<8x64xf32> -> vector<8x64xf32>
    %c2 = arith.constant 2 : index
    %c0_15 = arith.constant 0 : index
    %21 = vector.load %arg6[%c2, %c0_15] : memref<9x128xf32, #tpu.memory_space<vmem>>, vector<1x64xf32>
    %22 = vector.broadcast %21 : vector<1x64xf32> to vector<8x64xf32>
    %23 = arith.addf %20, %22 : vector<8x64xf32>
    %cst_16 = arith.constant 0.000000e+00 : f32
    %24 = vector.broadcast %cst_16 : f32 to vector<8x64xf32>
    %25 = arith.maximumf %23, %24 : vector<8x64xf32>
    %c1_17 = arith.constant 1 : index
    %c0_18 = arith.constant 0 : index
    %c0_19 = arith.constant 0 : index
    %26 = vector.load %arg4[%c1_17, %c0_18, %c0_19] : memref<6x64x64xbf16, #tpu.memory_space<vmem>>, vector<1x64x64xbf16>
    %27 = vector.shape_cast %26 : vector<1x64x64xbf16> to vector<64x64xbf16>
    %28 = arith.truncf %25 : vector<8x64xf32> to vector<8x64xbf16>
    %cst_20 = arith.constant dense<0.000000e+00> : vector<8x64xf32>
    %29 = tpu.matmul %28, %27, %cst_20 {dimension_numbers = #tpu.dot_dimension_numbers<[1], [0], [0], [1], [0, 0, 1, 1], [], []>} : vector<8x64xbf16>, vector<64x64xbf16>, vector<8x64xf32> -> vector<8x64xf32>
    %c3 = arith.constant 3 : index
    %c0_21 = arith.constant 0 : index
    %30 = vector.load %arg6[%c3, %c0_21] : memref<9x128xf32, #tpu.memory_space<vmem>>, vector<1x64xf32>
    %31 = vector.broadcast %30 : vector<1x64xf32> to vector<8x64xf32>
    %32 = arith.addf %29, %31 : vector<8x64xf32>
    %cst_22 = arith.constant 0.000000e+00 : f32
    %33 = vector.broadcast %cst_22 : f32 to vector<8x64xf32>
    %34 = arith.maximumf %32, %33 : vector<8x64xf32>
    %c2_23 = arith.constant 2 : index
    %c0_24 = arith.constant 0 : index
    %c0_25 = arith.constant 0 : index
    %35 = vector.load %arg4[%c2_23, %c0_24, %c0_25] : memref<6x64x64xbf16, #tpu.memory_space<vmem>>, vector<1x64x64xbf16>
    %36 = vector.shape_cast %35 : vector<1x64x64xbf16> to vector<64x64xbf16>
    %37 = arith.truncf %34 : vector<8x64xf32> to vector<8x64xbf16>
    %cst_26 = arith.constant dense<0.000000e+00> : vector<8x64xf32>
    %38 = tpu.matmul %37, %36, %cst_26 {dimension_numbers = #tpu.dot_dimension_numbers<[1], [0], [0], [1], [0, 0, 1, 1], [], []>} : vector<8x64xbf16>, vector<64x64xbf16>, vector<8x64xf32> -> vector<8x64xf32>
    %c4 = arith.constant 4 : index
    %c0_27 = arith.constant 0 : index
    %39 = vector.load %arg6[%c4, %c0_27] : memref<9x128xf32, #tpu.memory_space<vmem>>, vector<1x64xf32>
    %40 = vector.broadcast %39 : vector<1x64xf32> to vector<8x64xf32>
    %41 = arith.addf %38, %40 : vector<8x64xf32>
    %cst_28 = arith.constant 0.000000e+00 : f32
    %42 = vector.broadcast %cst_28 : f32 to vector<8x64xf32>
    %43 = arith.maximumf %41, %42 : vector<8x64xf32>
    %44 = arith.addf %43, %16 : vector<8x64xf32>
    %c3_29 = arith.constant 3 : index
    %c0_30 = arith.constant 0 : index
    %c0_31 = arith.constant 0 : index
    %45 = vector.load %arg4[%c3_29, %c0_30, %c0_31] : memref<6x64x64xbf16, #tpu.memory_space<vmem>>, vector<1x64x64xbf16>
    %46 = vector.shape_cast %45 : vector<1x64x64xbf16> to vector<64x64xbf16>
    %47 = arith.truncf %44 : vector<8x64xf32> to vector<8x64xbf16>
    %cst_32 = arith.constant dense<0.000000e+00> : vector<8x64xf32>
    %48 = tpu.matmul %47, %46, %cst_32 {dimension_numbers = #tpu.dot_dimension_numbers<[1], [0], [0], [1], [0, 0, 1, 1], [], []>} : vector<8x64xbf16>, vector<64x64xbf16>, vector<8x64xf32> -> vector<8x64xf32>
    %c5 = arith.constant 5 : index
    %c0_33 = arith.constant 0 : index
    %49 = vector.load %arg6[%c5, %c0_33] : memref<9x128xf32, #tpu.memory_space<vmem>>, vector<1x64xf32>
    %50 = vector.broadcast %49 : vector<1x64xf32> to vector<8x64xf32>
    %51 = arith.addf %48, %50 : vector<8x64xf32>
    %cst_34 = arith.constant 0.000000e+00 : f32
    %52 = vector.broadcast %cst_34 : f32 to vector<8x64xf32>
    %53 = arith.maximumf %51, %52 : vector<8x64xf32>
    %c4_35 = arith.constant 4 : index
    %c0_36 = arith.constant 0 : index
    %c0_37 = arith.constant 0 : index
    %54 = vector.load %arg4[%c4_35, %c0_36, %c0_37] : memref<6x64x64xbf16, #tpu.memory_space<vmem>>, vector<1x64x64xbf16>
    %55 = vector.shape_cast %54 : vector<1x64x64xbf16> to vector<64x64xbf16>
    %56 = arith.truncf %53 : vector<8x64xf32> to vector<8x64xbf16>
    %cst_38 = arith.constant dense<0.000000e+00> : vector<8x64xf32>
    %57 = tpu.matmul %56, %55, %cst_38 {dimension_numbers = #tpu.dot_dimension_numbers<[1], [0], [0], [1], [0, 0, 1, 1], [], []>} : vector<8x64xbf16>, vector<64x64xbf16>, vector<8x64xf32> -> vector<8x64xf32>
    %c6 = arith.constant 6 : index
    %c0_39 = arith.constant 0 : index
    %58 = vector.load %arg6[%c6, %c0_39] : memref<9x128xf32, #tpu.memory_space<vmem>>, vector<1x64xf32>
    %59 = vector.broadcast %58 : vector<1x64xf32> to vector<8x64xf32>
    %60 = arith.addf %57, %59 : vector<8x64xf32>
    %cst_40 = arith.constant 0.000000e+00 : f32
    %61 = vector.broadcast %cst_40 : f32 to vector<8x64xf32>
    %62 = arith.maximumf %60, %61 : vector<8x64xf32>
    %c5_41 = arith.constant 5 : index
    %c0_42 = arith.constant 0 : index
    %c0_43 = arith.constant 0 : index
    %63 = vector.load %arg4[%c5_41, %c0_42, %c0_43] : memref<6x64x64xbf16, #tpu.memory_space<vmem>>, vector<1x64x64xbf16>
    %64 = vector.shape_cast %63 : vector<1x64x64xbf16> to vector<64x64xbf16>
    %65 = arith.truncf %62 : vector<8x64xf32> to vector<8x64xbf16>
    %cst_44 = arith.constant dense<0.000000e+00> : vector<8x64xf32>
    %66 = tpu.matmul %65, %64, %cst_44 {dimension_numbers = #tpu.dot_dimension_numbers<[1], [0], [0], [1], [0, 0, 1, 1], [], []>} : vector<8x64xbf16>, vector<64x64xbf16>, vector<8x64xf32> -> vector<8x64xf32>
    %c7 = arith.constant 7 : index
    %c0_45 = arith.constant 0 : index
    %67 = vector.load %arg6[%c7, %c0_45] : memref<9x128xf32, #tpu.memory_space<vmem>>, vector<1x64xf32>
    %68 = vector.broadcast %67 : vector<1x64xf32> to vector<8x64xf32>
    %69 = arith.addf %66, %68 : vector<8x64xf32>
    %cst_46 = arith.constant 0.000000e+00 : f32
    %70 = vector.broadcast %cst_46 : f32 to vector<8x64xf32>
    %71 = arith.maximumf %69, %70 : vector<8x64xf32>
    %72 = arith.addf %71, %44 : vector<8x64xf32>
    %c0_47 = arith.constant 0 : index
    %c0_48 = arith.constant 0 : index
    %73 = vector.load %arg5[%c0_47, %c0_48] : memref<64x128xbf16, #tpu.memory_space<vmem>>, vector<64x128xbf16>
    %74 = arith.truncf %72 : vector<8x64xf32> to vector<8x64xbf16>
    %cst_49 = arith.constant dense<0.000000e+00> : vector<8x128xf32>
    %75 = tpu.matmul %74, %73, %cst_49 {dimension_numbers = #tpu.dot_dimension_numbers<[1], [0], [0], [1], [0, 0, 1, 1], [], []>} : vector<8x64xbf16>, vector<64x128xbf16>, vector<8x128xf32> -> vector<8x128xf32>
    %c8 = arith.constant 8 : index
    %c0_50 = arith.constant 0 : index
    %76 = vector.load %arg6[%c8, %c0_50] : memref<9x128xf32, #tpu.memory_space<vmem>>, vector<1x128xf32>
    %77 = vector.broadcast %76 : vector<1x128xf32> to vector<8x128xf32>
    %78 = arith.addf %75, %77 : vector<8x128xf32>
    %c0_51 = arith.constant 0 : index
    %c0_52 = arith.constant 0 : index
    %79 = vector.load %arg7[%c0_51, %c0_52] : memref<8x128xf32, #tpu.memory_space<vmem>>, vector<8x128xf32>
    tpu.vector_store %arg7[%c0_51, %c0_52], %78 {strides = array<i32>} : memref<8x128xf32, #tpu.memory_space<vmem>>, vector<8x128xf32>,
    return
  }
  func.func @transform_0(%arg0: i32) -> (i32, i32) {
    %c0_i32 = arith.constant 0 : i32
    %c0_i32_0 = arith.constant 0 : i32
    return %arg0, %c0_i32 : i32, i32
  }
  func.func @transform_1(%arg0: i32) -> (i32, i32) {
    %c0_i32 = arith.constant 0 : i32
    %c0_i32_0 = arith.constant 0 : i32
    %c0_i32_1 = arith.constant 0 : i32
    return %c0_i32, %c0_i32_0 : i32, i32
  }
  func.func @transform_2(%arg0: i32) -> (i32, i32) {
    %c0_i32 = arith.constant 0 : i32
    %c0_i32_0 = arith.constant 0 : i32
    %c0_i32_1 = arith.constant 0 : i32
    return %c0_i32, %c0_i32_0 : i32, i32
  }
  func.func @transform_3(%arg0: i32) -> (i32, i32, i32) {
    %c0_i32 = arith.constant 0 : i32
    %c0_i32_0 = arith.constant 0 : i32
    %c0_i32_1 = arith.constant 0 : i32
    %c0_i32_2 = arith.constant 0 : i32
    return %c0_i32, %c0_i32_0, %c0_i32_1 : i32, i32, i32
  }
  func.func @transform_4(%arg0: i32) -> (i32, i32) {
    %c0_i32 = arith.constant 0 : i32
    %c0_i32_0 = arith.constant 0 : i32
    %c0_i32_1 = arith.constant 0 : i32
    return %c0_i32, %c0_i32_0 : i32, i32
  }
  func.func @transform_5(%arg0: i32) -> (i32, i32) {
    %c0_i32 = arith.constant 0 : i32
    %c0_i32_0 = arith.constant 0 : i32
    %c0_i32_1 = arith.constant 0 : i32
    return %c0_i32, %c0_i32_0 : i32, i32
  }
  func.func @transform_6(%arg0: i32) -> (i32, i32) {
    %c0_i32 = arith.constant 0 : i32
    %c0_i32_0 = arith.constant 0 : i32
    return %arg0, %c0_i32 : i32, i32
  }
}

</mosaic_0001>

<llo_original>
// kernel: tpu_custom_call.1
$region0: #{tpu_custom_call.1}
  #allocation0 [shape = 'u32[]', space=smem, size = 0x4, offset = 0x4, fixed_abs, tag = 'smem constant byte address 0x4 - core index']
  #allocation1 [shape = 'u32[144,128]{1,0:T(1,128)}', space=vmem, size = 0x12000, scoped, tag = 'internal scratch']
  %s0 = inlined_call_operand.hbm [shape: f32[8,16], index: 0, kind: input, shape index: {}]
  %s1 = inlined_call_operand.hbm [shape: bf16[16,32], index: 1, kind: input, shape index: {}]
  %s2 = inlined_call_operand.hbm [shape: bf16[32,64], index: 2, kind: input, shape index: {}]
  %s3 = inlined_call_operand.hbm [shape: bf16[6,64,64], index: 3, kind: input, shape index: {}]
  %s4 = inlined_call_operand.hbm [shape: bf16[64,128], index: 4, kind: input, shape index: {}]
  %s5 = inlined_call_operand.hbm [shape: f32[9,128], index: 5, kind: input, shape index: {}]
  %s6 = inlined_call_operand.hbm [shape: f32[8,128], index: 6, kind: output, shape index: {}]
  %s7 = sld [smem:[#allocation0]]
  $region58: #{tpu_custom_call.1} parent=0
    _
  %s9 = ssub.s32 1, %s7
  %s10 = scalar_select 0, %s9, %s7
  $region1: #{tpu_custom_call.1} parent=0
    #allocation2 [shape = 'u8[4096]{0}', space=vmem, size = 0x1000, scoped, tag = 'input window, operand 0, single buffered']
    #allocation3 [shape = 's32[1]{0}', space=sflag, size = 0x4, scoped, tag = 'scoped memory for tpu_custom_call.1']
    #allocation4 [shape = 's32[1]{0}', space=sflag, size = 0x4, scoped, tag = 'scoped memory for tpu_custom_call.1']
    #allocation5 [shape = 'u8[4096]{0}', space=vmem, size = 0x1000, scoped, tag = 'input window, operand 1, single buffered']
    #allocation6 [shape = 's32[1]{0}', space=sflag, size = 0x4, scoped, tag = 'scoped memory for tpu_custom_call.1']
    #allocation7 [shape = 'u8[8192]{0}', space=vmem, size = 0x2000, scoped, tag = 'input window, operand 2, single buffered']
    #allocation8 [shape = 'u8[98304]{0}', space=vmem, size = 0x18000, scoped, tag = 'input window, operand 3, single buffered']
    #allocation9 [shape = 's32[1]{0}', space=sflag, size = 0x4, scoped, tag = 'scoped memory for tpu_custom_call.1']
    #allocation10 [shape = 'u8[16384]{0}', space=vmem, size = 0x4000, scoped, tag = 'input window, operand 4, single buffered']
    #allocation11 [shape = 'u8[8192]{0}', space=vmem, size = 0x2000, scoped, tag = 'input window, operand 5, single buffered']
    #allocation12 [shape = 's32[1]{0}', space=sflag, size = 0x4, scoped, tag = 'scoped memory for tpu_custom_call.1']
    #allocation13 [shape = 'u8[4096]{0}', space=vmem, size = 0x1000, scoped, tag = 'output window, operand 0, single buffered']
    %11 = vsyncpa [#allocation3], 0
    %12 = vsyncpa [#allocation6], 0
    %13 = vsyncpa [#allocation9], 0
    %14 = vsyncpa [#allocation12], 0
    %15 = vsyncpa [#allocation4], 0
    // Predicated region
    $region2: #{tpu_custom_call.1} parent=1 // pred_check
      _
    $region3: #{tpu_custom_call.1} parent=1 // pred_check_branch
      %17 = sbr.rel (0) target = $region5
    $region4: #{tpu_custom_call.1} parent=1 // pred_region
      %s19 = ssub.s32 128, 128
      %20 = vsyncadd [#allocation3], %s19
      %s22 = sshll.u32 [#allocation2], 4
      %s23 = int_to_ptr.vmem [resolvable:$true] %s22
      %25 = dma.hbm_to_vmem [thread:$0]  %s0, 128, %s23, [#allocation3]
    $region5: #{tpu_custom_call.1} parent=1 // pred_fallthru
      _
    // Predicated region
    $region6: #{tpu_custom_call.1} parent=1 // pred_check
      _
    $region7: #{tpu_custom_call.1} parent=1 // pred_check_branch
      %27 = sbr.rel (0) target = $region9
    $region8: #{tpu_custom_call.1} parent=1 // pred_region
      %s29 = ssub.s32 128, 128
      %30 = vsyncadd [#allocation6], %s29
      %s31 = sshll.u32 [#allocation5], 4
      %s32 = int_to_ptr.vmem [resolvable:$true] %s31
      %37 = dma.hbm_to_vmem [thread:$0]  %s1, 128, %s32, [#allocation6], 64, 64, 4
    $region9: #{tpu_custom_call.1} parent=1 // pred_fallthru
      _
    // Predicated region
    $region10: #{tpu_custom_call.1} parent=1 // pred_check
      _
    $region11: #{tpu_custom_call.1} parent=1 // pred_check_branch
      %39 = sbr.rel (0) target = $region13
    $region12: #{tpu_custom_call.1} parent=1 // pred_region
      %s41 = ssub.s32 256, 256
      %42 = vsyncadd [#allocation6], %s41
      %s43 = sshll.u32 [#allocation7], 4
      %s44 = int_to_ptr.vmem [resolvable:$true] %s43
      %49 = dma.hbm_to_vmem [thread:$0]  %s2, 256, %s44, [#allocation6], 64, 64, 4
    $region13: #{tpu_custom_call.1} parent=1 // pred_fallthru
      _
    // Predicated region
    $region14: #{tpu_custom_call.1} parent=1 // pred_check
      _
    $region15: #{tpu_custom_call.1} parent=1 // pred_check_branch
      %51 = sbr.rel (0) target = $region17
    $region16: #{tpu_custom_call.1} parent=1 // pred_region
      %s53 = ssub.s32 3072, 3072
      %54 = vsyncadd [#allocation9], %s53
      %s55 = sshll.u32 [#allocation8], 4
      %s56 = int_to_ptr.vmem [resolvable:$true] %s55
      %61 = dma.hbm_to_vmem [thread:$0]  %s3, 3072, %s56, [#allocation9], 64, 64, 4
    $region17: #{tpu_custom_call.1} parent=1 // pred_fallthru
      _
    // Predicated region
    $region18: #{tpu_custom_call.1} parent=1 // pred_check
      _
    $region19: #{tpu_custom_call.1} parent=1 // pred_check_branch
      %63 = sbr.rel (0) target = $region21
    $region20: #{tpu_custom_call.1} parent=1 // pred_region
      %s65 = ssub.s32 512, 512
      %66 = vsyncadd [#allocation9], %s65
      %s67 = sshll.u32 [#allocation10], 4
      %s68 = int_to_ptr.vmem [resolvable:$true] %s67
      %73 = dma.hbm_to_vmem [thread:$0]  %s4, 512, %s68, [#allocation9], 64, 64, 4
    $region21: #{tpu_custom_call.1} parent=1 // pred_fallthru
      _
    // Predicated region
    $region22: #{tpu_custom_call.1} parent=1 // pred_check
      _
    $region23: #{tpu_custom_call.1} parent=1 // pred_check_branch
      %75 = sbr.rel (0) target = $region25
    $region24: #{tpu_custom_call.1} parent=1 // pred_region
      %s77 = ssub.s32 256, 256
      %78 = vsyncadd [#allocation12], %s77
      %s79 = sshll.u32 [#allocation11], 4
      %s80 = int_to_ptr.vmem [resolvable:$true] %s79
      %85 = dma.hbm_to_vmem [thread:$0]  %s5, 256, %s80, [#allocation12], 128, 128, 8
    $region25: #{tpu_custom_call.1} parent=1 // pred_fallthru
      _
    // Predicated region
    $region26: #{tpu_custom_call.1} parent=1 // pred_check
      _
    $region27: #{tpu_custom_call.1} parent=1 // pred_check_branch
      %87 = sbr.rel (0) target = $region29
    $region28: #{tpu_custom_call.1} parent=1 // pred_region
      %88 = dma.done [#allocation3], 128
    $region29: #{tpu_custom_call.1} parent=1 // pred_fallthru
      _
    // Predicated region
    $region30: #{tpu_custom_call.1} parent=1 // pred_check
      _
    $region31: #{tpu_custom_call.1} parent=1 // pred_check_branch
      %90 = sbr.rel (0) target = $region33
    $region32: #{tpu_custom_call.1} parent=1 // pred_region
      %91 = dma.done [#allocation6], 128
    $region33: #{tpu_custom_call.1} parent=1 // pred_fallthru
      _
    // Predicated region
    $region34: #{tpu_custom_call.1} parent=1 // pred_check
      _
    $region35: #{tpu_custom_call.1} parent=1 // pred_check_branch
      %93 = sbr.rel (0) target = $region37
    $region36: #{tpu_custom_call.1} parent=1 // pred_region
      %94 = dma.done [#allocation6], 256
    $region37: #{tpu_custom_call.1} parent=1 // pred_fallthru
      _
    // Predicated region
    $region38: #{tpu_custom_call.1} parent=1 // pred_check
      _
    $region39: #{tpu_custom_call.1} parent=1 // pred_check_branch
      %96 = sbr.rel (0) target = $region41
    $region40: #{tpu_custom_call.1} parent=1 // pred_region
      %97 = dma.done [#allocation9], 3072
    $region41: #{tpu_custom_call.1} parent=1 // pred_fallthru
      _
    // Predicated region
    $region42: #{tpu_custom_call.1} parent=1 // pred_check
      _
    $region43: #{tpu_custom_call.1} parent=1 // pred_check_branch
      %99 = sbr.rel (0) target = $region45
    $region44: #{tpu_custom_call.1} parent=1 // pred_region
      %100 = dma.done [#allocation9], 512
    $region45: #{tpu_custom_call.1} parent=1 // pred_fallthru
      _
    // Predicated region
    $region46: #{tpu_custom_call.1} parent=1 // pred_check
      _
    $region47: #{tpu_custom_call.1} parent=1 // pred_check_branch
      %102 = sbr.rel (0) target = $region49
    $region48: #{tpu_custom_call.1} parent=1 // pred_region
      %103 = dma.done [#allocation12], 256
    $region49: #{tpu_custom_call.1} parent=1 // pred_fallthru
      _
    %v105 = vld [vmem:[#allocation2] sm:$0xff]
    %v106 = vld [vmem:[#allocation5] sm:$0xf]
    %v107 = vld [vmem:[#allocation5 + $0x4] sm:$0xf]
    %v108 = vpack.c.bf16 %v105, %v105
    %v109 = vld [vmem:[#allocation11] sm:$0x1]
    %v110 = vlaneseq
    %v111 = vshrl.u32 %v110, 7
    %v112 = vsub.s32 0, %v111
    %v113 = vrot.slane %v109, %v112
    %v116 = vunpack.c.l.b16 %v106
    %v117 = vunpack.c.l.b16 %v107
    %v118 = vpack.c.b16 %v117, %v116
    %vm120 = vcmask 130048
    %v122 = vsel %vm120, %v108, 0
    %124 = vmatprep.subr.bf16.mxu0 0
    %125 = vmatpush1.bf16.msra.mxu0 0
    %126 = vmatprep.subr.bf16.mxu0 0
    %127 = vmatpush1.bf16.msra.mxu0 0
    %128 = vmatprep.subr.bf16.mxu0 0
    %129 = vmatpush1.bf16.msra.mxu0 0
    %130 = vmatprep.subr.bf16.mxu0 0
    %131 = vmatpush1.bf16.msra.mxu0 0
    %132 = vmatprep.subr.bf16.mxu0 0
    %133 = vmatpush1.bf16.msra.mxu0 0
    %134 = vmatprep.subr.bf16.mxu0 0
    %135 = vmatpush1.bf16.msra.mxu0 0
    %136 = vmatprep.subr.bf16.mxu0 0
    %137 = vmatpush1.bf16.msra.mxu0 0
    %138 = vmatprep.subr.bf16.mxu0 0
    %139 = vmatpush1.bf16.msra.mxu0 %v118
    %140 = vmatprep.subr.bf16.mxu0 0
    %141 = vmatpush2.bf16.msra.mxu0 0
    %142 = vmatprep.subr.bf16.mxu0 0
    %143 = vmatpush2.bf16.msra.mxu0 0
    %144 = vmatprep.subr.bf16.mxu0 0
    %145 = vmatpush2.bf16.msra.mxu0 0
    %146 = vmatprep.subr.bf16.mxu0 0
    %147 = vmatpush2.bf16.msra.mxu0 0
    %148 = vmatprep.subr.bf16.mxu0 0
    %149 = vmatpush2.bf16.msra.mxu0 0
    %150 = vmatprep.subr.bf16.mxu0 0
    %151 = vmatpush2.bf16.msra.mxu0 0
    %152 = vmatprep.subr.bf16.mxu0 0
    %153 = vmatpush2.bf16.msra.mxu0 0
    %154 = vmatprep.subr.bf16.mxu0 0
    %155 = vmatpush2.bf16.msra.mxu0 0
    %156 = vmatprep.mubr.bf16.mxu0 0
    %157 = vmatmul.mubr.bf16.gmra.mxu0 %v122
    %v158 = vpop.f32.mrf.mxu0
    %v159 = vadd.f32 %v113, %v158
    %v160 = vpop.f32.mrf.mxu0
    %v161 = vpop.f32.mrf.mxu0
    %v162 = vpop.f32.mrf.mxu0
    %163 = vdwg.mxu0
    %v164 = vmax.f32 %v159, 0.0
    %v165 = vld [vmem:[#allocation7] sm:$0xf]
    %v166 = vld [vmem:[#allocation7 + $0x4] sm:$0xf]
    %v167 = vld [vmem:[#allocation7 + $0x8] sm:$0xf]
    %v168 = vld [vmem:[#allocation7 + $0xc] sm:$0xf]
    %v169 = vpack.c.bf16 %v164, %v164
    %v170 = vld [vmem:[#allocation11 + $0x1] sm:$0x1]
    %v171 = vlaneseq
    %v172 = vshrl.u32 %v171, 7
    %v173 = vsub.s32 0, %v172
    %v174 = vrot.slane %v170, %v173
    %v179 = vunpack.c.l.b16 %v165
    %v180 = vunpack.c.l.b16 %v166
    %v181 = vunpack.c.l.b16 %v167
    %v182 = vunpack.c.l.b16 %v168
    %v183 = vpack.c.b16 %v180, %v179
    %v184 = vpack.c.b16 %v182, %v181
    %vm187 = vcmask 261120
    %v189 = vsel %vm187, %v169, 0
    %191 = vmatprep.subr.bf16.mxu0 0
    %192 = vmatpush1.bf16.msra.mxu0 0
    %193 = vmatprep.subr.bf16.mxu0 0
    %194 = vmatpush1.bf16.msra.mxu0 0
    %195 = vmatprep.subr.bf16.mxu0 0
    %196 = vmatpush1.bf16.msra.mxu0 0
    %197 = vmatprep.subr.bf16.mxu0 0
    %198 = vmatpush1.bf16.msra.mxu0 0
    %199 = vmatprep.subr.bf16.mxu0 0
    %200 = vmatpush1.bf16.msra.mxu0 0
    %201 = vmatprep.subr.bf16.mxu0 0
    %202 = vmatpush1.bf16.msra.mxu0 0
    %203 = vmatprep.subr.bf16.mxu0 0
    %204 = vmatpush1.bf16.msra.mxu0 %v184
    %205 = vmatprep.subr.bf16.mxu0 0
    %206 = vmatpush1.bf16.msra.mxu0 %v183
    %207 = vmatprep.subr.bf16.mxu0 0
    %208 = vmatpush2.bf16.msra.mxu0 0
    %209 = vmatprep.subr.bf16.mxu0 0
    %210 = vmatpush2.bf16.msra.mxu0 0
    %211 = vmatprep.subr.bf16.mxu0 0
    %212 = vmatpush2.bf16.msra.mxu0 0
    %213 = vmatprep.subr.bf16.mxu0 0
    %214 = vmatpush2.bf16.msra.mxu0 0
    %215 = vmatprep.subr.bf16.mxu0 0
    %216 = vmatpush2.bf16.msra.mxu0 0
    %217 = vmatprep.subr.bf16.mxu0 0
    %218 = vmatpush2.bf16.msra.mxu0 0
    %219 = vmatprep.subr.bf16.mxu0 0
    %220 = vmatpush2.bf16.msra.mxu0 0
    %221 = vmatprep.subr.bf16.mxu0 0
    %222 = vmatpush2.bf16.msra.mxu0 0
    %223 = vmatprep.mubr.bf16.mxu0 0
    %224 = vmatmul.mubr.bf16.gmra.mxu0 %v189
    %v225 = vpop.f32.mrf.mxu0
    %v226 = vadd.f32 %v174, %v225
    %v227 = vpop.f32.mrf.mxu0
    %v228 = vpop.f32.mrf.mxu0
    %v229 = vpop.f32.mrf.mxu0
    %230 = vdwg.mxu0
    %v231 = vmax.f32 %v226, 0.0
    %v232 = vld [vmem:[#allocation8] sm:$0xf]
    %v233 = vld [vmem:[#allocation8 + $0x4] sm:$0xf]
    %v234 = vld [vmem:[#allocation8 + $0x8] sm:$0xf]
    %v235 = vld [vmem:[#allocation8 + $0xc] sm:$0xf]
    %v236 = vld [vmem:[#allocation8 + $0x10] sm:$0xf]
    %v237 = vld [vmem:[#allocation8 + $0x14] sm:$0xf]
    %v238 = vld [vmem:[#allocation8 + $0x18] sm:$0xf]
    %v239 = vld [vmem:[#allocation8 + $0x1c] sm:$0xf]
    %v240 = vpack.c.bf16 %v231, %v231
    %v241 = vld [vmem:[#allocation11 + $0x2] sm:$0x1]
    %v242 = vlaneseq
    %v243 = vshrl.u32 %v242, 7
    %v244 = vsub.s32 0, %v243
    %v245 = vrot.slane %v241, %v244
    %v254 = vunpack.c.l.b16 %v232
    %v255 = vunpack.c.l.b16 %v233
    %v256 = vunpack.c.l.b16 %v234
    %v257 = vunpack.c.l.b16 %v235
    %v258 = vunpack.c.l.b16 %v236
    %v259 = vunpack.c.l.b16 %v237
    %v260 = vunpack.c.l.b16 %v238
    %v261 = vunpack.c.l.b16 %v239
    %v262 = vpack.c.b16 %v255, %v254
    %v263 = vpack.c.b16 %v257, %v256
    %v264 = vpack.c.b16 %v259, %v258
    %v265 = vpack.c.b16 %v261, %v260
    %vm270 = vcmask 523264
    %v272 = vsel %vm270, %v240, 0
    %274 = vmatprep.subr.bf16.mxu0 0
    %275 = vmatpush1.bf16.msra.mxu0 0
    %276 = vmatprep.subr.bf16.mxu0 0
    %277 = vmatpush1.bf16.msra.mxu0 0
    %278 = vmatprep.subr.bf16.mxu0 0
    %279 = vmatpush1.bf16.msra.mxu0 0
    %280 = vmatprep.subr.bf16.mxu0 0
    %281 = vmatpush1.bf16.msra.mxu0 0
    %282 = vmatprep.subr.bf16.mxu0 0
    %283 = vmatpush1.bf16.msra.mxu0 %v265
    %284 = vmatprep.subr.bf16.mxu0 0
    %285 = vmatpush1.bf16.msra.mxu0 %v264
    %286 = vmatprep.subr.bf16.mxu0 0
    %287 = vmatpush1.bf16.msra.mxu0 %v263
    %288 = vmatprep.subr.bf16.mxu0 0
    %289 = vmatpush1.bf16.msra.mxu0 %v262
    %290 = vmatprep.subr.bf16.mxu0 0
    %291 = vmatpush2.bf16.msra.mxu0 0
    %292 = vmatprep.subr.bf16.mxu0 0
    %293 = vmatpush2.bf16.msra.mxu0 0
    %294 = vmatprep.subr.bf16.mxu0 0
    %295 = vmatpush2.bf16.msra.mxu0 0
    %296 = vmatprep.subr.bf16.mxu0 0
    %297 = vmatpush2.bf16.msra.mxu0 0
    %298 = vmatprep.subr.bf16.mxu0 0
    %299 = vmatpush2.bf16.msra.mxu0 0
    %300 = vmatprep.subr.bf16.mxu0 0
    %301 = vmatpush2.bf16.msra.mxu0 0
    %302 = vmatprep.subr.bf16.mxu0 0
    %303 = vmatpush2.bf16.msra.mxu0 0
    %304 = vmatprep.subr.bf16.mxu0 0
    %305 = vmatpush2.bf16.msra.mxu0 0
    %306 = vmatprep.mubr.bf16.mxu0 0
    %307 = vmatmul.mubr.bf16.gmra.mxu0 %v272
    %v308 = vpop.f32.mrf.mxu0
    %v309 = vadd.f32 %v245, %v308
    %v310 = vpop.f32.mrf.mxu0
    %v311 = vpop.f32.mrf.mxu0
    %v312 = vpop.f32.mrf.mxu0
    %313 = vdwg.mxu0
    %v314 = vmax.f32 %v309, 0.0
    %s315 = scalar_lea.vmem [#allocation8], 32
    %v316 = vld [vmem:[%s315] sm:$0xf]
    %v317 = vld [vmem:[%s315 + $0x4] sm:$0xf]
    %v318 = vld [vmem:[%s315 + $0x8] sm:$0xf]
    %v319 = vld [vmem:[%s315 + $0xc] sm:$0xf]
    %v320 = vld [vmem:[%s315 + $0x10] sm:$0xf]
    %v321 = vld [vmem:[%s315 + $0x14] sm:$0xf]
    %v322 = vld [vmem:[%s315 + $0x18] sm:$0xf]
    %v323 = vld [vmem:[%s315 + $0x1c] sm:$0xf]
    %v324 = vpack.c.bf16 %v314, %v314
    %v325 = vld [vmem:[#allocation11 + $0x3] sm:$0x1]
    %v326 = vlaneseq
    %v327 = vshrl.u32 %v326, 7
    %v328 = vsub.s32 0, %v327
    %v329 = vrot.slane %v325, %v328
    %v338 = vunpack.c.l.b16 %v316
    %v339 = vunpack.c.l.b16 %v317
    %v340 = vunpack.c.l.b16 %v318
    %v341 = vunpack.c.l.b16 %v319
    %v342 = vunpack.c.l.b16 %v320
    %v343 = vunpack.c.l.b16 %v321
    %v344 = vunpack.c.l.b16 %v322
    %v345 = vunpack.c.l.b16 %v323
    %v346 = vpack.c.b16 %v339, %v338
    %v347 = vpack.c.b16 %v341, %v340
    %v348 = vpack.c.b16 %v343, %v342
    %v349 = vpack.c.b16 %v345, %v344
    %v355 = vsel %vm270, %v324, 0
    %357 = vmatprep.subr.bf16.mxu0 0
    %358 = vmatpush1.bf16.msra.mxu0 0
    %359 = vmatprep.subr.bf16.mxu0 0
    %360 = vmatpush1.bf16.msra.mxu0 0
    %361 = vmatprep.subr.bf16.mxu0 0
    %362 = vmatpush1.bf16.msra.mxu0 0
    %363 = vmatprep.subr.bf16.mxu0 0
    %364 = vmatpush1.bf16.msra.mxu0 0
    %365 = vmatprep.subr.bf16.mxu0 0
    %366 = vmatpush1.bf16.msra.mxu0 %v349
    %367 = vmatprep.subr.bf16.mxu0 0
    %368 = vmatpush1.bf16.msra.mxu0 %v348
    %369 = vmatprep.subr.bf16.mxu0 0
    %370 = vmatpush1.bf16.msra.mxu0 %v347
    %371 = vmatprep.subr.bf16.mxu0 0
    %372 = vmatpush1.bf16.msra.mxu0 %v346
    %373 = vmatprep.subr.bf16.mxu0 0
    %374 = vmatpush2.bf16.msra.mxu0 0
    %375 = vmatprep.subr.bf16.mxu0 0
    %376 = vmatpush2.bf16.msra.mxu0 0
    %377 = vmatprep.subr.bf16.mxu0 0
    %378 = vmatpush2.bf16.msra.mxu0 0
    %379 = vmatprep.subr.bf16.mxu0 0
    %380 = vmatpush2.bf16.msra.mxu0 0
    %381 = vmatprep.subr.bf16.mxu0 0
    %382 = vmatpush2.bf16.msra.mxu0 0
    %383 = vmatprep.subr.bf16.mxu0 0
    %384 = vmatpush2.bf16.msra.mxu0 0
    %385 = vmatprep.subr.bf16.mxu0 0
    %386 = vmatpush2.bf16.msra.mxu0 0
    %387 = vmatprep.subr.bf16.mxu0 0
    %388 = vmatpush2.bf16.msra.mxu0 0
    %389 = vmatprep.mubr.bf16.mxu0 0
    %390 = vmatmul.mubr.bf16.gmra.mxu0 %v355
    %v391 = vpop.f32.mrf.mxu0
    %v392 = vadd.f32 %v329, %v391
    %v393 = vpop.f32.mrf.mxu0
    %v394 = vpop.f32.mrf.mxu0
    %v395 = vpop.f32.mrf.mxu0
    %396 = vdwg.mxu0
    %v397 = vmax.f32 %v392, 0.0
    %s398 = scalar_lea.vmem [#allocation8], 64
    %v399 = vld [vmem:[%s398] sm:$0xf]
    %v400 = vld [vmem:[%s398 + $0x4] sm:$0xf]
    %v401 = vld [vmem:[%s398 + $0x8] sm:$0xf]
    %v402 = vld [vmem:[%s398 + $0xc] sm:$0xf]
    %v403 = vld [vmem:[%s398 + $0x10] sm:$0xf]
    %v404 = vld [vmem:[%s398 + $0x14] sm:$0xf]
    %v405 = vld [vmem:[%s398 + $0x18] sm:$0xf]
    %v406 = vld [vmem:[%s398 + $0x1c] sm:$0xf]
    %v407 = vpack.c.bf16 %v397, %v397
    %v408 = vld [vmem:[#allocation11 + $0x4] sm:$0x1]
    %v409 = vlaneseq
    %v410 = vshrl.u32 %v409, 7
    %v411 = vsub.s32 0, %v410
    %v412 = vrot.slane %v408, %v411
    %v421 = vunpack.c.l.b16 %v399
    %v422 = vunpack.c.l.b16 %v400
    %v423 = vunpack.c.l.b16 %v401
    %v424 = vunpack.c.l.b16 %v402
    %v425 = vunpack.c.l.b16 %v403
    %v426 = vunpack.c.l.b16 %v404
    %v427 = vunpack.c.l.b16 %v405
    %v428 = vunpack.c.l.b16 %v406
    %v429 = vpack.c.b16 %v422, %v421
    %v430 = vpack.c.b16 %v424, %v423
    %v431 = vpack.c.b16 %v426, %v425
    %v432 = vpack.c.b16 %v428, %v427
    %v438 = vsel %vm270, %v407, 0
    %440 = vmatprep.subr.bf16.mxu0 0
    %441 = vmatpush1.bf16.msra.mxu0 0
    %442 = vmatprep.subr.bf16.mxu0 0
    %443 = vmatpush1.bf16.msra.mxu0 0
    %444 = vmatprep.subr.bf16.mxu0 0
    %445 = vmatpush1.bf16.msra.mxu0 0
    %446 = vmatprep.subr.bf16.mxu0 0
    %447 = vmatpush1.bf16.msra.mxu0 0
    %448 = vmatprep.subr.bf16.mxu0 0
    %449 = vmatpush1.bf16.msra.mxu0 %v432
    %450 = vmatprep.subr.bf16.mxu0 0
    %451 = vmatpush1.bf16.msra.mxu0 %v431
    %452 = vmatprep.subr.bf16.mxu0 0
    %453 = vmatpush1.bf16.msra.mxu0 %v430
    %454 = vmatprep.subr.bf16.mxu0 0
    %455 = vmatpush1.bf16.msra.mxu0 %v429
    %456 = vmatprep.subr.bf16.mxu0 0
    %457 = vmatpush2.bf16.msra.mxu0 0
    %458 = vmatprep.subr.bf16.mxu0 0
    %459 = vmatpush2.bf16.msra.mxu0 0
    %460 = vmatprep.subr.bf16.mxu0 0
    %461 = vmatpush2.bf16.msra.mxu0 0
    %462 = vmatprep.subr.bf16.mxu0 0
    %463 = vmatpush2.bf16.msra.mxu0 0
    %464 = vmatprep.subr.bf16.mxu0 0
    %465 = vmatpush2.bf16.msra.mxu0 0
    %466 = vmatprep.subr.bf16.mxu0 0
    %467 = vmatpush2.bf16.msra.mxu0 0
    %468 = vmatprep.subr.bf16.mxu0 0
    %469 = vmatpush2.bf16.msra.mxu0 0
    %470 = vmatprep.subr.bf16.mxu0 0
    %471 = vmatpush2.bf16.msra.mxu0 0
    %472 = vmatprep.mubr.bf16.mxu0 0
    %473 = vmatmul.mubr.bf16.gmra.mxu0 %v438
    %v474 = vpop.f32.mrf.mxu0
    %v475 = vadd.f32 %v412, %v474
    %v476 = vpop.f32.mrf.mxu0
    %v477 = vpop.f32.mrf.mxu0
    %v478 = vpop.f32.mrf.mxu0
    %479 = vdwg.mxu0
    %v480 = vmax.f32 %v475, 0.0
    %v481 = vadd.f32 %v480, %v231
    %s482 = scalar_lea.vmem [#allocation8], 96
    %v483 = vld [vmem:[%s482] sm:$0xf]
    %v484 = vld [vmem:[%s482 + $0x4] sm:$0xf]
    %v485 = vld [vmem:[%s482 + $0x8] sm:$0xf]
    %v486 = vld [vmem:[%s482 + $0xc] sm:$0xf]
    %v487 = vld [vmem:[%s482 + $0x10] sm:$0xf]
    %v488 = vld [vmem:[%s482 + $0x14] sm:$0xf]
    %v489 = vld [vmem:[%s482 + $0x18] sm:$0xf]
    %v490 = vld [vmem:[%s482 + $0x1c] sm:$0xf]
    %v491 = vpack.c.bf16 %v481, %v481
    %v492 = vld [vmem:[#allocation11 + $0x5] sm:$0x1]
    %v493 = vlaneseq
    %v494 = vshrl.u32 %v493, 7
    %v495 = vsub.s32 0, %v494
    %v496 = vrot.slane %v492, %v495
    %v505 = vunpack.c.l.b16 %v483
    %v506 = vunpack.c.l.b16 %v484
    %v507 = vunpack.c.l.b16 %v485
    %v508 = vunpack.c.l.b16 %v486
    %v509 = vunpack.c.l.b16 %v487
    %v510 = vunpack.c.l.b16 %v488
    %v511 = vunpack.c.l.b16 %v489
    %v512 = vunpack.c.l.b16 %v490
    %v513 = vpack.c.b16 %v506, %v505
    %v514 = vpack.c.b16 %v508, %v507
    %v515 = vpack.c.b16 %v510, %v509
    %v516 = vpack.c.b16 %v512, %v511
    %v522 = vsel %vm270, %v491, 0
    %524 = vmatprep.subr.bf16.mxu0 0
    %525 = vmatpush1.bf16.msra.mxu0 0
    %526 = vmatprep.subr.bf16.mxu0 0
    %527 = vmatpush1.bf16.msra.mxu0 0
    %528 = vmatprep.subr.bf16.mxu0 0
    %529 = vmatpush1.bf16.msra.mxu0 0
    %530 = vmatprep.subr.bf16.mxu0 0
    %531 = vmatpush1.bf16.msra.mxu0 0
    %532 = vmatprep.subr.bf16.mxu0 0
    %533 = vmatpush1.bf16.msra.mxu0 %v516
    %534 = vmatprep.subr.bf16.mxu0 0
    %535 = vmatpush1.bf16.msra.mxu0 %v515
    %536 = vmatprep.subr.bf16.mxu0 0
    %537 = vmatpush1.bf16.msra.mxu0 %v514
    %538 = vmatprep.subr.bf16.mxu0 0
    %539 = vmatpush1.bf16.msra.mxu0 %v513
    %540 = vmatprep.subr.bf16.mxu0 0
    %541 = vmatpush2.bf16.msra.mxu0 0
    %542 = vmatprep.subr.bf16.mxu0 0
    %543 = vmatpush2.bf16.msra.mxu0 0
    %544 = vmatprep.subr.bf16.mxu0 0
    %545 = vmatpush2.bf16.msra.mxu0 0
    %546 = vmatprep.subr.bf16.mxu0 0
    %547 = vmatpush2.bf16.msra.mxu0 0
    %548 = vmatprep.subr.bf16.mxu0 0
    %549 = vmatpush2.bf16.msra.mxu0 0
    %550 = vmatprep.subr.bf16.mxu0 0
    %551 = vmatpush2.bf16.msra.mxu0 0
    %552 = vmatprep.subr.bf16.mxu0 0
    %553 = vmatpush2.bf16.msra.mxu0 0
    %554 = vmatprep.subr.bf16.mxu0 0
    %555 = vmatpush2.bf16.msra.mxu0 0
    %556 = vmatprep.mubr.bf16.mxu0 0
    %557 = vmatmul.mubr.bf16.gmra.mxu0 %v522
    %v558 = vpop.f32.mrf.mxu0
    %v559 = vadd.f32 %v496, %v558
    %v560 = vpop.f32.mrf.mxu0
    %v561 = vpop.f32.mrf.mxu0
    %v562 = vpop.f32.mrf.mxu0
    %563 = vdwg.mxu0
    %v564 = vmax.f32 %v559, 0.0
    %s565 = scalar_lea.vmem [#allocation8], 128
    %v566 = vld [vmem:[%s565] sm:$0xf]
    %v567 = vld [vmem:[%s565 + $0x4] sm:$0xf]
    %v568 = vld [vmem:[%s565 + $0x8] sm:$0xf]
    %v569 = vld [vmem:[%s565 + $0xc] sm:$0xf]
    %v570 = vld [vmem:[%s565 + $0x10] sm:$0xf]
    %v571 = vld [vmem:[%s565 + $0x14] sm:$0xf]
    %v572 = vld [vmem:[%s565 + $0x18] sm:$0xf]
    %v573 = vld [vmem:[%s565 + $0x1c] sm:$0xf]
    %v574 = vpack.c.bf16 %v564, %v564
    %v575 = vld [vmem:[#allocation11 + $0x6] sm:$0x1]
    %v576 = vlaneseq
    %v577 = vshrl.u32 %v576, 7
    %v578 = vsub.s32 0, %v577
    %v579 = vrot.slane %v575, %v578
    %v588 = vunpack.c.l.b16 %v566
    %v589 = vunpack.c.l.b16 %v567
    %v590 = vunpack.c.l.b16 %v568
    %v591 = vunpack.c.l.b16 %v569
    %v592 = vunpack.c.l.b16 %v570
    %v593 = vunpack.c.l.b16 %v571
    %v594 = vunpack.c.l.b16 %v572
    %v595 = vunpack.c.l.b16 %v573
    %v596 = vpack.c.b16 %v589, %v588
    %v597 = vpack.c.b16 %v591, %v590
    %v598 = vpack.c.b16 %v593, %v592
    %v599 = vpack.c.b16 %v595, %v594
    %v605 = vsel %vm270, %v574, 0
    %607 = vmatprep.subr.bf16.mxu0 0
    %608 = vmatpush1.bf16.msra.mxu0 0
    %609 = vmatprep.subr.bf16.mxu0 0
    %610 = vmatpush1.bf16.msra.mxu0 0
    %611 = vmatprep.subr.bf16.mxu0 0
    %612 = vmatpush1.bf16.msra.mxu0 0
    %613 = vmatprep.subr.bf16.mxu0 0
    %614 = vmatpush1.bf16.msra.mxu0 0
    %615 = vmatprep.subr.bf16.mxu0 0
    %616 = vmatpush1.bf16.msra.mxu0 %v599
    %617 = vmatprep.subr.bf16.mxu0 0
    %618 = vmatpush1.bf16.msra.mxu0 %v598
    %619 = vmatprep.subr.bf16.mxu0 0
    %620 = vmatpush1.bf16.msra.mxu0 %v597
    %621 = vmatprep.subr.bf16.mxu0 0
    %622 = vmatpush1.bf16.msra.mxu0 %v596
    %623 = vmatprep.subr.bf16.mxu0 0
    %624 = vmatpush2.bf16.msra.mxu0 0
    %625 = vmatprep.subr.bf16.mxu0 0
    %626 = vmatpush2.bf16.msra.mxu0 0
    %627 = vmatprep.subr.bf16.mxu0 0
    %628 = vmatpush2.bf16.msra.mxu0 0
    %629 = vmatprep.subr.bf16.mxu0 0
    %630 = vmatpush2.bf16.msra.mxu0 0
    %631 = vmatprep.subr.bf16.mxu0 0
    %632 = vmatpush2.bf16.msra.mxu0 0
    %633 = vmatprep.subr.bf16.mxu0 0
    %634 = vmatpush2.bf16.msra.mxu0 0
    %635 = vmatprep.subr.bf16.mxu0 0
    %636 = vmatpush2.bf16.msra.mxu0 0
    %637 = vmatprep.subr.bf16.mxu0 0
    %638 = vmatpush2.bf16.msra.mxu0 0
    %639 = vmatprep.mubr.bf16.mxu0 0
    %640 = vmatmul.mubr.bf16.gmra.mxu0 %v605
    %v641 = vpop.f32.mrf.mxu0
    %v642 = vadd.f32 %v579, %v641
    %v643 = vpop.f32.mrf.mxu0
    %v644 = vpop.f32.mrf.mxu0
    %v645 = vpop.f32.mrf.mxu0
    %646 = vdwg.mxu0
    %v647 = vmax.f32 %v642, 0.0
    %s648 = scalar_lea.vmem [#allocation8], 160
    %v649 = vld [vmem:[%s648] sm:$0xf]
    %v650 = vld [vmem:[%s648 + $0x4] sm:$0xf]
    %v651 = vld [vmem:[%s648 + $0x8] sm:$0xf]
    %v652 = vld [vmem:[%s648 + $0xc] sm:$0xf]
    %v653 = vld [vmem:[%s648 + $0x10] sm:$0xf]
    %v654 = vld [vmem:[%s648 + $0x14] sm:$0xf]
    %v655 = vld [vmem:[%s648 + $0x18] sm:$0xf]
    %v656 = vld [vmem:[%s648 + $0x1c] sm:$0xf]
    %v657 = vpack.c.bf16 %v647, %v647
    %v658 = vld [vmem:[#allocation11 + $0x7] sm:$0x1]
    %v659 = vlaneseq
    %v660 = vshrl.u32 %v659, 7
    %v661 = vsub.s32 0, %v660
    %v662 = vrot.slane %v658, %v661
    %v671 = vunpack.c.l.b16 %v649
    %v672 = vunpack.c.l.b16 %v650
    %v673 = vunpack.c.l.b16 %v651
    %v674 = vunpack.c.l.b16 %v652
    %v675 = vunpack.c.l.b16 %v653
    %v676 = vunpack.c.l.b16 %v654
    %v677 = vunpack.c.l.b16 %v655
    %v678 = vunpack.c.l.b16 %v656
    %v679 = vpack.c.b16 %v672, %v671
    %v680 = vpack.c.b16 %v674, %v673
    %v681 = vpack.c.b16 %v676, %v675
    %v682 = vpack.c.b16 %v678, %v677
    %v688 = vsel %vm270, %v657, 0
    %690 = vmatprep.subr.bf16.mxu0 0
    %691 = vmatpush1.bf16.msra.mxu0 0
    %692 = vmatprep.subr.bf16.mxu0 0
    %693 = vmatpush1.bf16.msra.mxu0 0
    %694 = vmatprep.subr.bf16.mxu0 0
    %695 = vmatpush1.bf16.msra.mxu0 0
    %696 = vmatprep.subr.bf16.mxu0 0
    %697 = vmatpush1.bf16.msra.mxu0 0
    %698 = vmatprep.subr.bf16.mxu0 0
    %699 = vmatpush1.bf16.msra.mxu0 %v682
    %700 = vmatprep.subr.bf16.mxu0 0
    %701 = vmatpush1.bf16.msra.mxu0 %v681
    %702 = vmatprep.subr.bf16.mxu0 0
    %703 = vmatpush1.bf16.msra.mxu0 %v680
    %704 = vmatprep.subr.bf16.mxu0 0
    %705 = vmatpush1.bf16.msra.mxu0 %v679
    %706 = vmatprep.subr.bf16.mxu0 0
    %707 = vmatpush2.bf16.msra.mxu0 0
    %708 = vmatprep.subr.bf16.mxu0 0
    %709 = vmatpush2.bf16.msra.mxu0 0
    %710 = vmatprep.subr.bf16.mxu0 0
    %711 = vmatpush2.bf16.msra.mxu0 0
    %712 = vmatprep.subr.bf16.mxu0 0
    %713 = vmatpush2.bf16.msra.mxu0 0
    %714 = vmatprep.subr.bf16.mxu0 0
    %715 = vmatpush2.bf16.msra.mxu0 0
    %716 = vmatprep.subr.bf16.mxu0 0
    %717 = vmatpush2.bf16.msra.mxu0 0
    %718 = vmatprep.subr.bf16.mxu0 0
    %719 = vmatpush2.bf16.msra.mxu0 0
    %720 = vmatprep.subr.bf16.mxu0 0
    %721 = vmatpush2.bf16.msra.mxu0 0
    %722 = vmatprep.mubr.bf16.mxu0 0
    %723 = vmatmul.mubr.bf16.gmra.mxu0 %v688
    %v724 = vpop.f32.mrf.mxu0
    %v725 = vadd.f32 %v662, %v724
    %v726 = vpop.f32.mrf.mxu0
    %v727 = vpop.f32.mrf.mxu0
    %v728 = vpop.f32.mrf.mxu0
    %729 = vdwg.mxu0
    %v730 = vmax.f32 %v725, 0.0
    %v731 = vadd.f32 %v730, %v481
    %v732 = vld [vmem:[#allocation10] sm:$0xf]
    %v733 = vld [vmem:[#allocation10 + $0x4] sm:$0xf]
    %v734 = vld [vmem:[#allocation10 + $0x8] sm:$0xf]
    %v735 = vld [vmem:[#allocation10 + $0xc] sm:$0xf]
    %v736 = vld [vmem:[#allocation10 + $0x10] sm:$0xf]
    %v737 = vld [vmem:[#allocation10 + $0x14] sm:$0xf]
    %v738 = vld [vmem:[#allocation10 + $0x18] sm:$0xf]
    %v739 = vld [vmem:[#allocation10 + $0x1c] sm:$0xf]
    %v740 = vpack.c.bf16 %v731, %v731
    %v741 = vld [vmem:[#allocation11 + $0x8] sm:$0x1]
    %v742 = vlaneseq
    %v743 = vshrl.u32 %v742, 7
    %v744 = vsub.s32 0, %v743
    %v745 = vrot.slane %v741, %v744
    %v754 = vunpack.c.l.b16 %v732
    %v755 = vunpack.c.l.b16 %v733
    %v756 = vunpack.c.l.b16 %v734
    %v757 = vunpack.c.l.b16 %v735
    %v758 = vunpack.c.l.b16 %v736
    %v759 = vunpack.c.l.b16 %v737
    %v760 = vunpack.c.l.b16 %v738
    %v761 = vunpack.c.l.b16 %v739
    %v762 = vpack.c.b16 %v755, %v754
    %v763 = vpack.c.b16 %v757, %v756
    %v764 = vpack.c.b16 %v759, %v758
    %v765 = vpack.c.b16 %v761, %v760
    %v771 = vsel %vm270, %v740, 0
    %773 = vmatprep.subr.bf16.mxu0 0
    %774 = vmatpush1.bf16.msra.mxu0 0
    %775 = vmatprep.subr.bf16.mxu0 0
    %776 = vmatpush1.bf16.msra.mxu0 0
    %777 = vmatprep.subr.bf16.mxu0 0
    %778 = vmatpush1.bf16.msra.mxu0 0
    %779 = vmatprep.subr.bf16.mxu0 0
    %780 = vmatpush1.bf16.msra.mxu0 0
    %781 = vmatprep.subr.bf16.mxu0 0
    %782 = vmatpush1.bf16.msra.mxu0 %v765
    %783 = vmatprep.subr.bf16.mxu0 0
    %784 = vmatpush1.bf16.msra.mxu0 %v764
    %785 = vmatprep.subr.bf16.mxu0 0
    %786 = vmatpush1.bf16.msra.mxu0 %v763
    %787 = vmatprep.subr.bf16.mxu0 0
    %788 = vmatpush1.bf16.msra.mxu0 %v762
    %789 = vmatprep.subr.bf16.mxu0 0
    %790 = vmatpush2.bf16.msra.mxu0 0
    %791 = vmatprep.subr.bf16.mxu0 0
    %792 = vmatpush2.bf16.msra.mxu0 0
    %793 = vmatprep.subr.bf16.mxu0 0
    %794 = vmatpush2.bf16.msra.mxu0 0
    %795 = vmatprep.subr.bf16.mxu0 0
    %796 = vmatpush2.bf16.msra.mxu0 0
    %797 = vmatprep.subr.bf16.mxu0 0
    %798 = vmatpush2.bf16.msra.mxu0 0
    %799 = vmatprep.subr.bf16.mxu0 0
    %800 = vmatpush2.bf16.msra.mxu0 0
    %801 = vmatprep.subr.bf16.mxu0 0
    %802 = vmatpush2.bf16.msra.mxu0 0
    %803 = vmatprep.subr.bf16.mxu0 0
    %804 = vmatpush2.bf16.msra.mxu0 0
    %805 = vmatprep.mubr.bf16.mxu0 0
    %806 = vmatmul.mubr.bf16.gmra.mxu0 %v771
    %v807 = vpop.f32.mrf.mxu0
    %v808 = vadd.f32 %v745, %v807
    %v809 = vpop.f32.mrf.mxu0
    %v810 = vpop.f32.mrf.mxu0
    %v811 = vpop.f32.mrf.mxu0
    %812 = vdwg.mxu0
    %813 = vst [vmem:[#allocation13] sm:$0xff] %v808
    // Predicated region
    $region50: #{tpu_custom_call.1} parent=1 // pred_check
      _
    $region51: #{tpu_custom_call.1} parent=1 // pred_check_branch
      %815 = sbr.rel (0) target = $region53
    $region52: #{tpu_custom_call.1} parent=1 // pred_region
      %s817 = ssub.s32 128, 128
      %818 = vsyncadd [#allocation4], %s817
      %s820 = sshll.u32 [#allocation13], 4
      %s821 = int_to_ptr.vmem [resolvable:$true] %s820
      %823 = dma.vmem_to_hbm [thread:$0]  %s821, 128, %s6, [#allocation4]
    $region53: #{tpu_custom_call.1} parent=1 // pred_fallthru
      _
    // Predicated region
    $region54: #{tpu_custom_call.1} parent=1 // pred_check
      _
    $region55: #{tpu_custom_call.1} parent=1 // pred_check_branch
      %825 = sbr.rel (0) target = $region57
    $region56: #{tpu_custom_call.1} parent=1 // pred_region
      %826 = dma.done [#allocation4], 128
    $region57: #{tpu_custom_call.1} parent=1 // pred_fallthru
      _
    %827 = vsyncpa [#allocation3], 1
    %828 = vsyncpa [#allocation6], 1
    %829 = vsyncpa [#allocation9], 1
    %830 = vsyncpa [#allocation12], 1
    %831 = vsyncpa [#allocation4], 1

</llo_original>
